<compile_context>
chip_gen: v6e
topology: v6e:2x2x1
jax: 0.10.0
libtpu: 0.0.40
codegen_flags: <defaults>
</compile_context>

<pallas_src>
import jax
import jax.numpy as jnp
from jax import lax
from jax.experimental import pallas as pl
from jax.experimental.pallas import tpu as pltpu


# ------------------------- VMEM budget (generation aware) --------------------


def _vmem_budget_and_limit():
    """Returns (working_set_budget_bytes, vmem_limit_bytes) for this chip."""
    try:
        cap = int(pltpu.get_tpu_info().vmem_capacity_bytes)
    except Exception:  # unknown chip / interpret mode -> be conservative
        cap = 64 * 2**20
    if cap <= 64 * 2**20:            # v7x-class: 64 MiB physical per core
        return 40 * 2**20, 48 * 2**20
    return 80 * 2**20, 100 * 2**20   # v5e / v6e: 128 MiB physical


def _compiler_params(semantics, vmem_limit):
    return pltpu.CompilerParams(dimension_semantics=semantics,
                                vmem_limit_bytes=int(vmem_limit))


def _softmax_rowmax_minus(energy):
    """softmax(rowmax(energy) - energy, axis=-1).

    Softmax is shift invariant, so this equals exp(rowmin - energy) / sum(...),
    which is already numerically stable (exponents <= 0) and needs no extra
    (C, C) temporaries for the `energy_new` matrix.
    """
    row_min = jnp.min(energy, axis=-1, keepdims=True)
    p = jnp.exp(row_min - energy)
    return p / jnp.sum(p, axis=-1, keepdims=True)


# ----------------------------- kernels ---------------------------------------


def _cam_fused_kernel(x_ref, gamma_ref, out_ref):
    """Whole per-batch slab resident: energy -> softmax -> apply -> residual."""
    x = x_ref[0]                                              # (C, HW), x.dtype
    # energy = x @ x^T : contract the spatial (lane) dim of both operands.
    energy = lax.dot_general(x, x, (((1,), (1,)), ((), ())),
                             preferred_element_type=jnp.float32)   # (C, C) f32
    attn = _softmax_rowmax_minus(energy).astype(x.dtype)
    o = jnp.dot(attn, x, preferred_element_type=jnp.float32)       # (C, HW) f32
    out_ref[0] = (gamma_ref[0] * o + x).astype(out_ref.dtype)


def _make_attention_kernel(hw, tile, ragged):
    """Pass-1 kernel: accumulate energy over spatial tiles, softmax on last."""

    def kernel(x_ref, attn_ref, acc_ref):
        t = pl.program_id(1)

        @pl.when(t == 0)
        def _init():
            acc_ref[...] = jnp.zeros_like(acc_ref)

        x = x_ref[0]                                          # (C, tile)
        if ragged:
            # Mask out-of-range spatial columns of the (partial) tail tile so
            # garbage lanes cannot contribute to the energy accumulation.
            col = t * tile + lax.broadcasted_iota(jnp.int32, x.shape, 1)
            x = jnp.where(col < hw, x, jnp.zeros_like(x))
        acc_ref[...] += lax.dot_general(x, x, (((1,), (1,)), ((), ())),
                                        preferred_element_type=jnp.float32)

        @pl.when(t == pl.num_programs(1) - 1)
        def _finalize():
            attn_ref[0] = _softmax_rowmax_minus(acc_ref[...]).astype(
                attn_ref.dtype)

    return kernel


def _cam_apply_kernel(attn_ref, x_ref, gamma_ref, out_ref):
    """Pass-2 kernel: out_tile = gamma * (attn @ x_tile) + x_tile.

    The tail tile may contain out-of-bounds garbage columns in x; each output
    column depends only on the same x column, and out-of-bounds columns are
    dropped by the masked writeback, so no in-kernel mask is needed here.
    """
    x = x_ref[0]                                              # (C, tile)
    o = jnp.dot(attn_ref[0], x, preferred_element_type=jnp.float32)
    out_ref[0] = (gamma_ref[0] * o + x).astype(out_ref.dtype)


# ----------------------------- wrapper ----------------------------------------


def cam_module_forward(x_nchw, gamma, *, force_two_pass=False,
                       tile_override=None):
    """CAM_Module.forward.  x_nchw: (B, C, H, W); gamma: scalar / (1,) array.

    force_two_pass / tile_override are test knobs to exercise the large-HW
    fallback path on small shapes (tile_override must be a multiple of 128).
    """
    B, C, H, W = x_nchw.shape
    HW = H * W
    x_flat = x_nchw.reshape(B, C, HW)
    dtype = x_flat.dtype
    itemsize = jnp.dtype(dtype).itemsize
    gamma_arr = jnp.asarray(gamma, jnp.float32).reshape(1)

    budget, vmem_limit = _vmem_budget_and_limit()

    # ---- fused single-pass path ----------------------------------------------
    # Estimate: double-buffered x + out slabs, f32 temporaries for the apply
    # matmul / residual add, and a handful of (C, C) f32 softmax temporaries.
    fused_bytes = C * HW * (4 * itemsize + 8) + 8 * C * C * 4
    if (not force_two_pass) and fused_bytes <= budget:
        out_flat = pl.pallas_call(
            _cam_fused_kernel,
            out_shape=jax.ShapeDtypeStruct((B, C, HW), dtype),
            grid_spec=pltpu.PrefetchScalarGridSpec(
                num_scalar_prefetch=0,
                grid=(B,),
                in_specs=[
                    pl.BlockSpec((1, C, HW), lambda b: (b, 0, 0)),          # x
                    pl.BlockSpec(memory_space=pltpu.MemorySpace.SMEM),      # gamma
                ],
                out_specs=pl.BlockSpec((1, C, HW), lambda b: (b, 0, 0)),
            ),
            compiler_params=_compiler_params(("parallel",), vmem_limit),
        )(x_flat, gamma_arr)
        return out_flat.reshape(B, C, H, W)

    # ---- two-pass fallback for large HW ---------------------------------------
    # Derive the spatial tile from the VMEM budget (dominant pass-2 working set:
    # double-buffered x + out tiles in input dtype plus f32 matmul temporaries).
    fixed = 8 * C * C * 4
    per_tile = C * (4 * itemsize + 8)
    tile = max(128, ((max(budget - fixed, 0) // per_tile) // 128) * 128)
    if tile_override is not None:
        tile = int(tile_override)
    if tile >= HW:
        tile, n_tiles, ragged = HW, 1, False          # full-extent block
    else:
        n_tiles = -(-HW // tile)
        ragged = (HW % tile) != 0

    # ---- pass 1: per-batch (C, C) channel attention ---------------------------
    attn = pl.pallas_call(
        _make_attention_kernel(HW, tile, ragged),
        out_shape=jax.ShapeDtypeStruct((B, C, C), dtype),      # attn in x.dtype
        grid_spec=pltpu.PrefetchScalarGridSpec(
            num_scalar_prefetch=0,
            grid=(B, n_tiles),
            in_specs=[pl.BlockSpec((1, C, tile), lambda b, t: (b, 0, t))],
            out_specs=pl.BlockSpec((1, C, C), lambda b, t: (b, 0, 0)),
            scratch_shapes=[pltpu.VMEM((C, C), jnp.float32)],
        ),
        compiler_params=_compiler_params(("parallel", "arbitrary"), vmem_limit),
    )(x_flat)

    # ---- pass 2: out = gamma * (attn @ x) + x ---------------------------------
    out_flat = pl.pallas_call(
        _cam_apply_kernel,
        out_shape=jax.ShapeDtypeStruct((B, C, HW), dtype),
        grid_spec=pltpu.PrefetchScalarGridSpec(
            num_scalar_prefetch=0,
            grid=(B, n_tiles),
            in_specs=[
                pl.BlockSpec((1, C, C), lambda b, t: (b, 0, 0)),            # attn
                pl.BlockSpec((1, C, tile), lambda b, t: (b, 0, t)),         # x
                pl.BlockSpec(memory_space=pltpu.MemorySpace.SMEM),          # gamma
            ],
            out_specs=pl.BlockSpec((1, C, tile), lambda b, t: (b, 0, t)),
        ),
        compiler_params=_compiler_params(("parallel", "parallel"), vmem_limit),
    )(attn, x_flat, gamma_arr)

    return out_flat.reshape(B, C, H, W)


# ----------------------------- reference ---------------------------------------


def reference_forward(x, gamma):
    """Pure-JAX reference mirroring the PyTorch CAM_Module exactly (f32 math)."""
    B, C, H, W = x.shape
    q = x.reshape(B, C, H * W).astype(jnp.float32)
    energy = jnp.einsum('bcn,bdn->bcd', q, q, precision=lax.Precision.HIGHEST)
    e_new = jnp.max(energy, axis=-1, keepdims=True) - energy
    attn = jax.nn.softmax(e_new, axis=-1)
    out = jnp.einsum('bcd,bdn->bcn', attn, q,
                     precision=lax.Precision.HIGHEST).reshape(B, C, H, W)
    return jnp.asarray(gamma, jnp.float32).reshape(()) * out + x.astype(jnp.float32)


# ----------------------------- self-test ----------------------------------------


def _check(x, gamma, atol, **kw):
    out = jax.block_until_ready(cam_module_forward(x, gamma, **kw))
    assert out.shape == x.shape and out.dtype == x.dtype
    ref = reference_forward(x, gamma)
    assert jnp.allclose(out.astype(jnp.float32), ref, atol=atol, rtol=atol), (
        f"mismatch: max abs err "
        f"{jnp.max(jnp.abs(out.astype(jnp.float32) - ref))}")


if __name__ == "__main__":
    key = jax.random.PRNGKey(0)
    k1, k2, k3 = jax.random.split(key, 3)

    gamma0 = jnp.zeros((1,), dtype=jnp.float32)     # as in the PyTorch __init__
    gamma_nz = jnp.array([0.5], dtype=jnp.float32)

    # --- f32, fused single-pass path (default) --------------------------------
    x32 = 0.5 * jax.random.normal(k1, (2, 16, 16, 16), dtype=jnp.float32)
    _check(x32, gamma0, atol=1e-3)
    _check(x32, gamma_nz, atol=1e-3)

    # --- f32, forced two-pass path, evenly-divisible spatial tiling ------------
    _check(x32, gamma_nz, atol=1e-3, force_two_pass=True, tile_override=128)

    # --- f32, forced two-pass path, ragged tail tile (HW=169, tile=128) --------
    x_rag = 0.5 * jax.random.normal(k2, (2, 16, 13, 13), dtype=jnp.float32)
    _check(x_rag, gamma_nz, atol=1e-3, force_two_pass=True, tile_override=128)

    # --- bf16, lane-width C, fused and two-pass (ragged) paths ------------------
    xbf = (0.25 * jax.random.normal(k3, (1, 128, 12, 12))).astype(jnp.bfloat16)
    _check(xbf, gamma_nz, atol=5e-2)
    _check(xbf, gamma_nz, atol=5e-2, force_two_pass=True, tile_override=128)

    print("KERNEL_OK")
</pallas_src>

<mosaic_0001>
module attributes {stable_mosaic.version = 11 : i64} {
  func.func @_cam_fused_kernel(%arg0: i32, %arg1: memref<1x16x256xf32, #tpu.memory_space<vmem>>, %arg2: memref<1xf32, #tpu.memory_space<smem>>, %arg3: memref<1x16x256xf32, #tpu.memory_space<vmem>>) attributes {dimension_semantics = [#tpu.dimension_semantics<parallel>], iteration_bounds = array<i64: 2>, scalar_prefetch = 0 : i64, scratch_operands = 0 : i64, tpu.core_type = #tpu.core_type<tc>, window_params = [{transform_indices = @transform_0, window_bounds = array<i64: 1, 16, 256>}, {transform_indices = @transform_1, window_bounds = array<i64: 1>}, {transform_indices = @transform_2, window_bounds = array<i64: 1, 16, 256>}]} {
    %c0 = arith.constant 0 : index
    %c0_0 = arith.constant 0 : index
    %c0_1 = arith.constant 0 : index
    %0 = vector.load %arg1[%c0, %c0_0, %c0_1] : memref<1x16x256xf32, #tpu.memory_space<vmem>>, vector<1x16x256xf32>
    %1 = vector.shape_cast %0 : vector<1x16x256xf32> to vector<16x256xf32>
    %cst = arith.constant dense<0.000000e+00> : vector<16x16xf32>
    %2 = tpu.matmul %1, %1, %cst {dimension_numbers = #tpu.dot_dimension_numbers<[1], [1], [0], [0], [0, 0, 1, 0], [], []>} : vector<16x256xf32>, vector<16x256xf32>, vector<16x16xf32> -> vector<16x16xf32>
    %cst_2 = arith.constant dense<0x7F800000> : vector<16xf32>
    %3 = vector.multi_reduction <minimumf>, %2, %cst_2 [1] : vector<16x16xf32> to vector<16xf32>
    %4 = vector.shape_cast %3 : vector<16xf32> to vector<16x1xf32>
    %5 = vector.broadcast %4 : vector<16x1xf32> to vector<16x16xf32>
    %6 = arith.subf %5, %2 : vector<16x16xf32>
    %7 = math.exp %6 : vector<16x16xf32>
    %cst_3 = arith.constant dense<0.000000e+00> : vector<16xf32>
    %8 = vector.multi_reduction <add>, %7, %cst_3 [1] : vector<16x16xf32> to vector<16xf32>
    %9 = vector.shape_cast %8 : vector<16xf32> to vector<16x1xf32>
    %10 = vector.broadcast %9 : vector<16x1xf32> to vector<16x16xf32>
    %11 = arith.divf %7, %10 : vector<16x16xf32>
    %cst_4 = arith.constant dense<0.000000e+00> : vector<16x256xf32>
    %12 = tpu.matmul %11, %1, %cst_4 {dimension_numbers = #tpu.dot_dimension_numbers<[1], [0], [0], [1], [0, 0, 1, 1], [], []>} : vector<16x16xf32>, vector<16x256xf32>, vector<16x256xf32> -> vector<16x256xf32>
    %c0_5 = arith.constant 0 : index
    %13 = memref.load %arg2[%c0_5] : memref<1xf32, #tpu.memory_space<smem>>
    %14 = vector.broadcast %13 : f32 to vector<16x256xf32>
    %15 = arith.mulf %14, %12 : vector<16x256xf32>
    %16 = arith.addf %15, %1 : vector<16x256xf32>
    %c0_6 = arith.constant 0 : index
    %c0_7 = arith.constant 0 : index
    %c0_8 = arith.constant 0 : index
    %17 = vector.load %arg3[%c0_6, %c0_7, %c0_8] : memref<1x16x256xf32, #tpu.memory_space<vmem>>, vector<1x16x256xf32>
    %18 = vector.shape_cast %17 : vector<1x16x256xf32> to vector<16x256xf32>
    %19 = vector.shape_cast %16 : vector<16x256xf32> to vector<1x16x256xf32>
    tpu.vector_store %arg3[%c0_6, %c0_7, %c0_8], %19 {strides = array<i32>} : memref<1x16x256xf32, #tpu.memory_space<vmem>>, vector<1x16x256xf32>,
    return
  }
  func.func @transform_0(%arg0: i32) -> (i32, i32, i32) {
    %c0_i32 = arith.constant 0 : i32
    %c0_i32_0 = arith.constant 0 : i32
    %c0_i32_1 = arith.constant 0 : i32
    return %arg0, %c0_i32, %c0_i32_0 : i32, i32, i32
  }
  func.func @transform_1(%arg0: i32) -> i32 {
    %c0_i32 = arith.constant 0 : i32
    %c0_i32_0 = arith.constant 0 : i32
    return %c0_i32 : i32
  }
  func.func @transform_2(%arg0: i32) -> (i32, i32, i32) {
    %c0_i32 = arith.constant 0 : i32
    %c0_i32_0 = arith.constant 0 : i32
    %c0_i32_1 = arith.constant 0 : i32
    return %arg0, %c0_i32, %c0_i32_0 : i32, i32, i32
  }
}

</mosaic_0001>

<llo_original>
// kernel: tpu_custom_call.1
$region0: #{tpu_custom_call.1}
  #allocation0 [shape = 'u32[]', space=smem, size = 0x4, offset = 0x4, fixed_abs, tag = 'smem constant byte address 0x4 - core index']
  #allocation1 [shape = 'u32[144,128]{1,0:T(1,128)}', space=vmem, size = 0x12000, scoped, tag = 'internal scratch']
  #allocation2 [shape = 'f32[1]{0:T(128)S(6)}', space=smem, size = 0x200, scoped, tag = 'scoped memory for tpu_custom_call.1']
  %s0 = inlined_call_operand.hbm [shape: f32[2,16,256], index: 0, kind: input, shape index: {}]
  %s1 = inlined_call_operand.<no memory space> [shape: f32[1], index: 1, kind: input, shape index: {}]
  %s2 = inlined_call_operand.hbm [shape: f32[2,16,256], index: 2, kind: output, shape index: {}]
  %s3 = sld [smem:[#allocation0]]
  $region45: #{tpu_custom_call.1} parent=0
    _
  %s5 = ssub.s32 1, %s3
  %s6 = scalar_select 0, %s5, %s3
  %7 = sst [smem:[#allocation2]] %s1
  $region1: #{tpu_custom_call.1} parent=0
    #allocation3 [shape = 'u8[32768]{0}', space=vmem, size = 0x8000, scoped, tag = 'input window, operand 0']
    #allocation4 [shape = 's32[2]{0}', space=sflag, size = 0x8, scoped, tag = 'scoped memory for tpu_custom_call.1']
    #allocation5 [shape = 's32[2]{0}', space=sflag, size = 0x8, scoped, tag = 'scoped memory for tpu_custom_call.1']
    #allocation6 [shape = 'u8[32768]{0}', space=vmem, size = 0x8000, scoped, tag = 'output window, operand 0']
    %8 = vsyncpa [#allocation4], 0
    %s9 = scalar_lea.sflag [#allocation4], 1
    %10 = vsyncpa %s9, 0
    %11 = vsyncpa [#allocation5], 0
    %s12 = scalar_lea.sflag [#allocation5], 1
    %13 = vsyncpa %s12, 0
    loop: start=0, step=1, limit=4
    $region2: #{tpu_custom_call.1} parent=1 // loop_pre_header
      _
    $region3: #{tpu_custom_call.1} parent=1 // loop_header
      %s15 = sphi 0, %s19
      %p16 = scmp.ge.s32.totalorder %s15, 4
      %s25 = sphi 0, %s27
      %s28 = sphi 0, %s25
      %s29 = sphi 0, %s28
      %s45 = sphi 0, %s29
      %s49 = sphi 0, %s49
      %s51 = sphi 0, %s49
      %s52 = sphi 0, %s51
      %s66 = sphi 0, %s52
      %s72 = sphi 0, %s74
      %s75 = sphi 0, %s72
      %s76 = sphi 0, %s75
      %s92 = sphi 0, %s76
    $region4: #{tpu_custom_call.1} parent=1 // loop_header_branch
      %18 = sbr.rel (%p16) target = $region8
    $region5: #{tpu_custom_call.1} parent=1 // loop_body
      %s20 = ssub.s32 %s15, 1
      %s21 = ssub.s32 %s15, 2
      %s22 = sadd.s32 %s15, 1
      %s23 = ssub.s32 %s15, %s22
      %p24 = scmp.eq.s32.totalorder %s23, 0
      %s26 = sadd.s32 %s25, 1
      %s27 = scalar_select %p24, %s25, %s26
      %p30 = pneg %p24
      %p31 = scmp.eq.s32.totalorder %s15, 1
      %p32 = por %p30, %p31
      %p33 = scmp.ne.s32.totalorder %s25, %s28
      %p34 = scmp.eq.s32.totalorder %s15, 0
      %p35 = por %p33, %p34
      %p36 = scmp.ne.s32.totalorder %s25, %s28
      %p37 = scmp.eq.s32.totalorder %s20, 1
      %p38 = por %p36, %p37
      %p39 = scmp.ne.s32.totalorder %s28, %s29
      %p40 = scmp.eq.s32.totalorder %s20, 0
      %p41 = por %p39, %p40
      %p42 = scmp.ne.s32.totalorder %s28, %s29
      %p43 = scmp.eq.s32.totalorder %s21, 1
      %p44 = por %p42, %p43
      %p46 = scmp.ne.s32.totalorder %s29, %s45
      %p47 = scmp.eq.s32.totalorder %s21, 0
      %p48 = por %p46, %p47
      %s50 = sadd.s32 %s49, 1
      %p53 = scmp.eq.s32.totalorder %s15, 1
      %p54 = scmp.ne.s32.totalorder %s49, %s51
      %p55 = scmp.eq.s32.totalorder %s15, 0
      %p56 = por %p54, %p55
      %p57 = scmp.ne.s32.totalorder %s49, %s51
      %p58 = scmp.eq.s32.totalorder %s20, 1
      %p59 = por %p57, %p58
      %p60 = scmp.ne.s32.totalorder %s51, %s52
      %p61 = scmp.eq.s32.totalorder %s20, 0
      %p62 = por %p60, %p61
      %p63 = scmp.ne.s32.totalorder %s51, %s52
      %p64 = scmp.eq.s32.totalorder %s21, 1
      %p65 = por %p63, %p64
      %p67 = scmp.ne.s32.totalorder %s52, %s66
      %p68 = scmp.eq.s32.totalorder %s21, 0
      %p69 = por %p67, %p68
      %s70 = ssub.s32 %s15, %s22
      %p71 = scmp.eq.s32.totalorder %s70, 0
      %s73 = sadd.s32 %s72, 1
      %s74 = scalar_select %p71, %s72, %s73
      %p77 = pneg %p71
      %p78 = scmp.eq.s32.totalorder %s15, 1
      %p79 = por %p77, %p78
      %p80 = scmp.ne.s32.totalorder %s72, %s75
      %p81 = scmp.eq.s32.totalorder %s15, 0
      %p82 = por %p80, %p81
      %p83 = scmp.ne.s32.totalorder %s72, %s75
      %p84 = scmp.eq.s32.totalorder %s20, 1
      %p85 = por %p83, %p84
      %p86 = scmp.ne.s32.totalorder %s75, %s76
      %p87 = scmp.eq.s32.totalorder %s20, 0
      %p88 = por %p86, %p87
      %p89 = scmp.ne.s32.totalorder %s75, %s76
      %p90 = scmp.eq.s32.totalorder %s21, 1
      %p91 = por %p89, %p90
      %p93 = scmp.ne.s32.totalorder %s76, %s92
      %p94 = scmp.eq.s32.totalorder %s21, 0
      %p95 = por %p93, %p94
      %p96 = scmp.le.s32.totalorder 1, %s15
      %p97 = scmp.lt.s32.totalorder %s15, 3
      %p98 = pnand %p96, %p97
      %p99 = pneg %p98
      // Predicated region
      $region9: #{tpu_custom_call.1} parent=5 // pred_check
        _
      $region10: #{tpu_custom_call.1} parent=5 // pred_check_branch
        %101 = sbr.rel (%p98) target = $region12
      $region11: #{tpu_custom_call.1} parent=5 // pred_region
        %s102 = ssub.s32 %s15, 1
        // Predicated region
        $region13: #{tpu_custom_call.1} parent=11 // pred_check
          %p103 = pneg %p62
        $region14: #{tpu_custom_call.1} parent=11 // pred_check_branch
          %105 = sbr.rel (%p103) target = $region16
        $region15: #{tpu_custom_call.1} parent=11 // pred_region
          _
        $region16: #{tpu_custom_call.1} parent=11 // pred_fallthru
          _
      $region12: #{tpu_custom_call.1} parent=5 // pred_fallthru
        _
      %p106 = scmp.lt.s32.totalorder %s15, 2
      // Predicated region
      $region17: #{tpu_custom_call.1} parent=5 // pred_check
        %p107 = pneg %p106
      $region18: #{tpu_custom_call.1} parent=5 // pred_check_branch
        %109 = sbr.rel (%p107) target = $region20
      $region19: #{tpu_custom_call.1} parent=5 // pred_region
        // Predicated region
        $region21: #{tpu_custom_call.1} parent=19 // pred_check
          %p110 = pneg %p35
        $region22: #{tpu_custom_call.1} parent=19 // pred_check_branch
          %112 = sbr.rel (%p110) target = $region24
        $region23: #{tpu_custom_call.1} parent=19 // pred_region
          %s113 = sand.u32 %s25, 1
          %s114 = scalar_lea.sflag [#allocation4], %s113
          %s115 = sand.u32 %s25, 1
          %s116 = smul.addr %s115, 32
          %s117 = scalar_lea.vmem [#allocation3], %s116
          %s119 = ssub.s32 512, 512
          %120 = vsyncadd %s114, %s119
          %s121 = smul.addr %s15, 4
          %s122 = smul.addr %s121, 128
          %s123 = scalar_lea.hbm %s0, %s122
          %s124 = sshll.u32 %s117, 4
          %s125 = int_to_ptr.vmem [resolvable:$true] %s124
          %130 = dma.hbm_to_vmem [thread:$0]  %s123, 512, %s125, %s114, 256, 256, 16
        $region24: #{tpu_custom_call.1} parent=19 // pred_fallthru
          _
      $region20: #{tpu_custom_call.1} parent=5 // pred_fallthru
        _
      %p131 = scmp.le.s32.totalorder 1, %s15
      %p132 = scmp.lt.s32.totalorder %s15, 3
      %p133 = pnand %p131, %p132
      %p134 = pneg %p133
      // Predicated region
      $region25: #{tpu_custom_call.1} parent=5 // pred_check
        _
      $region26: #{tpu_custom_call.1} parent=5 // pred_check_branch
        %136 = sbr.rel (%p133) target = $region28
      $region27: #{tpu_custom_call.1} parent=5 // pred_region
        %s137 = ssub.s32 %s15, 1
        %s138 = sand.u32 %s28, 1
        %s139 = scalar_lea.sflag [#allocation4], %s138
        %s140 = sand.u32 %s28, 1
        %s141 = smul.addr %s140, 32
        %s142 = scalar_lea.vmem [#allocation3], %s141
        // Predicated region
        $region29: #{tpu_custom_call.1} parent=27 // pred_check
          %p143 = pneg %p41
        $region30: #{tpu_custom_call.1} parent=27 // pred_check_branch
          %145 = sbr.rel (%p143) target = $region32
        $region31: #{tpu_custom_call.1} parent=27 // pred_region
          %146 = dma.done %s139, 512
        $region32: #{tpu_custom_call.1} parent=27 // pred_fallthru
          _
        %s147 = sand.u32 %s28, 1
        %s148 = scalar_lea.sflag [#allocation4], %s147
        %s149 = sand.u32 %s28, 1
        %s150 = smul.addr %s149, 32
        %s151 = scalar_lea.vmem [#allocation3], %s150
        %p152 = pneg %p41
        %p153 = pneg %p38
        %p154 = pneg %p62
        %p155 = pneg %p59
        %p156 = pneg %p88
        %p157 = pneg %p85
        %s158 = sand.u32 %s75, 1
        %s159 = scalar_lea.sflag [#allocation5], %s158
        %s160 = sand.u32 %s75, 1
        %s161 = smul.addr %s160, 32
        %s162 = scalar_lea.vmem [#allocation6], %s161
        %v163 = vld [vmem:[%s142] sm:$0xff]
        %v164 = vld [vmem:[%s142 + $0x8] sm:$0xff]
        %v165 = vld [vmem:[%s142 + $0x10] sm:$0xff]
        %v166 = vld [vmem:[%s142 + $0x18] sm:$0xff]
        %167 = vmatprep.subr.mxu0 0.0
        %168 = vmatpush1.xpose.msra.mxu0 0.0
        %169 = vmatprep.subr.mxu0 0.0
        %170 = vmatpush1.xpose.msra.mxu0 0.0
        %171 = vmatprep.subr.mxu0 0.0
        %172 = vmatpush1.xpose.msra.mxu0 0.0
        %173 = vmatprep.subr.mxu0 0.0
        %174 = vmatpush1.xpose.msra.mxu0 0.0
        %175 = vmatprep.subr.mxu0 0.0
        %176 = vmatpush1.xpose.msra.mxu0 0.0
        %177 = vmatprep.subr.mxu0 0.0
        %178 = vmatpush1.xpose.msra.mxu0 0.0
        %179 = vmatprep.subr.mxu0 0.0
        %180 = vmatpush1.xpose.msra.mxu0 0.0
        %181 = vmatprep.subr.mxu0 0.0
        %182 = vmatpush1.xpose.msra.mxu0 0.0
        %183 = vmatprep.subr.mxu0 0.0
        %184 = vmatpush1.xpose.msra.mxu0 0.0
        %185 = vmatprep.subr.mxu0 0.0
        %186 = vmatpush1.xpose.msra.mxu0 0.0
        %187 = vmatprep.subr.mxu0 0.0
        %188 = vmatpush1.xpose.msra.mxu0 0.0
        %189 = vmatprep.subr.mxu0 0.0
        %190 = vmatpush1.xpose.msra.mxu0 0.0
        %191 = vmatprep.subr.mxu0 0.0
        %192 = vmatpush1.xpose.msra.mxu0 0.0
        %193 = vmatprep.subr.mxu0 0.0
        %194 = vmatpush1.xpose.msra.mxu0 0.0
        %195 = vmatprep.subr.mxu0 %v166
        %196 = vmatpush1.xpose.msra.mxu0 %v165
        %197 = vmatprep.subr.mxu0 %v164
        %198 = vmatpush1.xpose.msra.mxu0 %v163
        %199 = vmatprep.subr.mxu0 0.0
        %200 = vmatpush2.xpose.msra.mxu0 0.0
        %201 = vmatprep.subr.mxu0 0.0
        %202 = vmatpush2.xpose.msra.mxu0 0.0
        %203 = vmatprep.subr.mxu0 0.0
        %204 = vmatpush2.xpose.msra.mxu0 0.0
        %205 = vmatprep.subr.mxu0 0.0
        %206 = vmatpush2.xpose.msra.mxu0 0.0
        %207 = vmatprep.subr.mxu0 0.0
        %208 = vmatpush2.xpose.msra.mxu0 0.0
        %209 = vmatprep.subr.mxu0 0.0
        %210 = vmatpush2.xpose.msra.mxu0 0.0
        %211 = vmatprep.subr.mxu0 0.0
        %212 = vmatpush2.xpose.msra.mxu0 0.0
        %213 = vmatprep.subr.mxu0 0.0
        %214 = vmatpush2.xpose.msra.mxu0 0.0
        %215 = vmatprep.subr.mxu0 0.0
        %216 = vmatpush2.xpose.msra.mxu0 0.0
        %217 = vmatprep.subr.mxu0 0.0
        %218 = vmatpush2.xpose.msra.mxu0 0.0
        %219 = vmatprep.subr.mxu0 0.0
        %220 = vmatpush2.xpose.msra.mxu0 0.0
        %221 = vmatprep.subr.mxu0 0.0
        %222 = vmatpush2.xpose.msra.mxu0 0.0
        %223 = vmatprep.subr.mxu0 0.0
        %224 = vmatpush2.xpose.msra.mxu0 0.0
        %225 = vmatprep.subr.mxu0 0.0
        %226 = vmatpush2.xpose.msra.mxu0 0.0
        %227 = vmatprep.subr.mxu0 0.0
        %228 = vmatpush2.xpose.msra.mxu0 0.0
        %229 = vmatprep.subr.mxu0 0.0
        %230 = vmatpush2.xpose.msra.mxu0 0.0
        %231 = vmatprep.mubr.f32.mxu0 %v164
        %232 = vmatmul.mubr.f32.gmra.mxu0 %v163
        %v233 = vpop.f32.mrf.mxu0
        %v234 = vadd.f32 0.0, %v233
        %v235 = vpop.f32.mrf.mxu0
        %236 = vmatprep.mubr.f32.mxu0 %v166
        %237 = vmatmul.mubr.f32.gmra.mxu0 %v165
        %v238 = vpop.f32.mrf.mxu0
        %v239 = vadd.f32 0.0, %v238
        %v240 = vpop.f32.mrf.mxu0
        %241 = vdwg.mxu0
        %vm242 = vcmask 130048
        %v243 = vsel %vm242, %v234, inf
        %244 = vmin.xlane.f32.xlu0 %v243
        %v245 = vpop.xlane.xlu0 %244
        %v246 = vsel %vm242, %v239, inf
        %247 = vmin.xlane.f32.xlu0 %v246
        %v248 = vpop.xlane.xlu0 %247
        %v249 = vsub.f32 %v245, %v234
        %v250 = vsub.f32 %v248, %v239
        %v251 = vmul.f32 %v249, 1.442695
        %v252 = vpow.pop %v251
        %v253 = vmul.f32 %v250, 1.442695
        %v254 = vpow.pop %v253
        %v255 = vsel %vm242, %v252, 0.0
        %256 = vadd.xlane.f32.xlu0 %v255
        %v257 = vpop.xlane.xlu0 %256
        %v258 = vsel %vm242, %v254, 0.0
        %259 = vadd.xlane.f32.xlu0 %v258
        %v260 = vpop.xlane.xlu0 %259
        %v261 = vrcp.pop %v257
        %v262 = vmul.f32 %v252, %v261
        %v263 = vrcp.pop %v260
        %v264 = vmul.f32 %v254, %v263
        %v266 = vsel %vm242, %v262, 0
        %v269 = vsel %vm242, %v264, 0
        %271 = vmatprep.subr.mxu0 0.0
        %272 = vmatpush1.msra.mxu0 0.0
        %273 = vmatprep.subr.mxu0 0.0
        %274 = vmatpush1.msra.mxu0 0.0
        %275 = vmatprep.subr.mxu0 0.0
        %276 = vmatpush1.msra.mxu0 0.0
        %277 = vmatprep.subr.mxu0 0.0
        %278 = vmatpush1.msra.mxu0 0.0
        %279 = vmatprep.subr.mxu0 0.0
        %280 = vmatpush1.msra.mxu0 0.0
        %281 = vmatprep.subr.mxu0 0.0
        %282 = vmatpush1.msra.mxu0 0.0
        %283 = vmatprep.subr.mxu0 0.0
        %284 = vmatpush1.msra.mxu0 0.0
        %285 = vmatprep.subr.mxu0 0.0
        %286 = vmatpush1.msra.mxu0 0.0
        %287 = vmatprep.subr.mxu0 0.0
        %288 = vmatpush1.msra.mxu0 0.0
        %289 = vmatprep.subr.mxu0 0.0
        %290 = vmatpush1.msra.mxu0 0.0
        %291 = vmatprep.subr.mxu0 0.0
        %292 = vmatpush1.msra.mxu0 0.0
        %293 = vmatprep.subr.mxu0 0.0
        %294 = vmatpush1.msra.mxu0 0.0
        %295 = vmatprep.subr.mxu0 0.0
        %296 = vmatpush1.msra.mxu0 0.0
        %297 = vmatprep.subr.mxu0 0.0
        %298 = vmatpush1.msra.mxu0 0.0
        %299 = vmatprep.subr.mxu0 %v166
        %300 = vmatpush1.msra.mxu0 %v165
        %301 = vmatprep.subr.mxu0 %v164
        %302 = vmatpush1.msra.mxu0 %v163
        %303 = vmatprep.subr.mxu0 0.0
        %304 = vmatpush2.msra.mxu0 0.0
        %305 = vmatprep.subr.mxu0 0.0
        %306 = vmatpush2.msra.mxu0 0.0
        %307 = vmatprep.subr.mxu0 0.0
        %308 = vmatpush2.msra.mxu0 0.0
        %309 = vmatprep.subr.mxu0 0.0
        %310 = vmatpush2.msra.mxu0 0.0
        %311 = vmatprep.subr.mxu0 0.0
        %312 = vmatpush2.msra.mxu0 0.0
        %313 = vmatprep.subr.mxu0 0.0
        %314 = vmatpush2.msra.mxu0 0.0
        %315 = vmatprep.subr.mxu0 0.0
        %316 = vmatpush2.msra.mxu0 0.0
        %317 = vmatprep.subr.mxu0 0.0
        %318 = vmatpush2.msra.mxu0 0.0
        %319 = vmatprep.subr.mxu0 0.0
        %320 = vmatpush2.msra.mxu0 0.0
        %321 = vmatprep.subr.mxu0 0.0
        %322 = vmatpush2.msra.mxu0 0.0
        %323 = vmatprep.subr.mxu0 0.0
        %324 = vmatpush2.msra.mxu0 0.0
        %325 = vmatprep.subr.mxu0 0.0
        %326 = vmatpush2.msra.mxu0 0.0
        %327 = vmatprep.subr.mxu0 0.0
        %328 = vmatpush2.msra.mxu0 0.0
        %329 = vmatprep.subr.mxu0 0.0
        %330 = vmatpush2.msra.mxu0 0.0
        %331 = vmatprep.subr.mxu0 0.0
        %332 = vmatpush2.msra.mxu0 0.0
        %333 = vmatprep.subr.mxu0 0.0
        %334 = vmatpush2.msra.mxu0 0.0
        %335 = vmatprep.mubr.f32.mxu0 0.0
        %336 = vmatmul.mubr.f32.gmra.mxu0 %v266
        %v337 = vpop.f32.mrf.mxu0
        %v338 = vadd.f32 0.0, %v337
        %v339 = vpop.f32.mrf.mxu0
        %v340 = vadd.f32 0.0, %v339
        %341 = vmatprep.mubr.f32.mxu0 0.0
        %342 = vmatmul.mubr.f32.gmra.mxu0 %v269
        %v343 = vpop.f32.mrf.mxu0
        %v344 = vadd.f32 0.0, %v343
        %v345 = vpop.f32.mrf.mxu0
        %v346 = vadd.f32 0.0, %v345
        %347 = vdwg.mxu0
        %s348 = sld [smem:[#allocation2]]
        %v349 = vstv %s348
        %v350 = vmul.f32 %v349, %v338
        %v351 = vmul.f32 %v349, %v340
        %v352 = vmul.f32 %v349, %v344
        %v353 = vmul.f32 %v349, %v346
        %v354 = vadd.f32 %v350, %v163
        %v355 = vadd.f32 %v351, %v164
        %v356 = vadd.f32 %v352, %v165
        %v357 = vadd.f32 %v353, %v166
        %358 = vst [vmem:[%s162] sm:$0xff] %v354
        %359 = vst [vmem:[%s162 + $0x8] sm:$0xff] %v355
        %360 = vst [vmem:[%s162 + $0x10] sm:$0xff] %v356
        %361 = vst [vmem:[%s162 + $0x18] sm:$0xff] %v357
        %s362 = sand.u32 %s75, 1
        %s363 = scalar_lea.sflag [#allocation5], %s362
        %s364 = sand.u32 %s75, 1
        %s365 = smul.addr %s364, 32
        %s366 = scalar_lea.vmem [#allocation6], %s365
        // Predicated region
        $region33: #{tpu_custom_call.1} parent=27 // pred_check
          %p367 = pneg %p85
        $region34: #{tpu_custom_call.1} parent=27 // pred_check_branch
          %369 = sbr.rel (%p367) target = $region36
        $region35: #{tpu_custom_call.1} parent=27 // pred_region
          %s371 = ssub.s32 512, 512
          %372 = vsyncadd %s363, %s371
          %s373 = smul.addr %s20, 4
          %s374 = smul.addr %s373, 128
          %s375 = scalar_lea.hbm %s2, %s374
          %s376 = sshll.u32 %s366, 4
          %s377 = int_to_ptr.vmem [resolvable:$true] %s376
          %382 = dma.vmem_to_hbm [thread:$0]  %s377, 512, %s375, %s363, 256, 256, 16
        $region36: #{tpu_custom_call.1} parent=27 // pred_fallthru
          _
      $region28: #{tpu_custom_call.1} parent=5 // pred_fallthru
        _
      %p383 = scmp.le.s32.totalorder 2, %s15
      // Predicated region
      $region37: #{tpu_custom_call.1} parent=5 // pred_check
        %p384 = pneg %p383
      $region38: #{tpu_custom_call.1} parent=5 // pred_check_branch
        %386 = sbr.rel (%p384) target = $region40
      $region39: #{tpu_custom_call.1} parent=5 // pred_region
        %s387 = ssub.s32 %s15, 2
        // Predicated region
        $region41: #{tpu_custom_call.1} parent=39 // pred_check
          %p388 = pneg %p91
        $region42: #{tpu_custom_call.1} parent=39 // pred_check_branch
          %390 = sbr.rel (%p388) target = $region44
        $region43: #{tpu_custom_call.1} parent=39 // pred_region
          %s391 = sand.u32 %s76, 1
          %s392 = scalar_lea.sflag [#allocation5], %s391
          %s393 = sand.u32 %s76, 1
          %s394 = smul.addr %s393, 32
          %s395 = scalar_lea.vmem [#allocation6], %s394
          %396 = dma.done %s392, 512
        $region44: #{tpu_custom_call.1} parent=39 // pred_fallthru
          _
      $region40: #{tpu_custom_call.1} parent=5 // pred_fallthru
        _
    $region6: #{tpu_custom_call.1} parent=1 // loop_footer
      %s19 = sadd.s32 1, %s15
    $region7: #{tpu_custom_call.1} parent=1 // loop_footer_branch
      %14 = sbr.rel target = $region3
    $region8: #{tpu_custom_call.1} parent=1 // loop_exit
      _
    %397 = vsyncpa [#allocation4], 1
    %s398 = scalar_lea.sflag [#allocation4], 1
    %399 = vsyncpa %s398, 1
    %400 = vsyncpa [#allocation5], 1
    %s401 = scalar_lea.sflag [#allocation5], 1
    %402 = vsyncpa %s401, 1

</llo_original>
